<compile_context>
chip_gen: v7x
topology: tpu7x:2x2x1
jax: 0.10.0
libtpu: 0.0.40
codegen_flags: <defaults>
</compile_context>

<pallas_src>
import functools

import jax
import jax.numpy as jnp
from jax import lax
from jax.experimental import pallas as pl
from jax.experimental.pallas import tpu as pltpu


def _round_up(x, m):
    return (x + m - 1) // m * m


# --------------------------------------------------------------------------
# Kernel 1: HW2 = ReLU( ReLU(A @ XW1 + b1) @ Wfc + bfc ) @ W2
# grid = (row_tiles, k_tiles); reduction over k accumulates into acc_ref.
# --------------------------------------------------------------------------
def _layer1_kernel(a_ref, xw1_ref, b1_ref, wfc_ref, bfc_ref, w2_ref,
                   hw2_ref, acc_ref, *, compute_dtype):
    k = pl.program_id(1)

    @pl.when(k == 0)
    def _():
        acc_ref[...] = jnp.zeros_like(acc_ref)

    # A and XW1 blocks are already stored in compute_dtype; MXU matmul with
    # f32 accumulation.
    acc_ref[...] += jnp.dot(a_ref[...], xw1_ref[...],
                            preferred_element_type=jnp.float32)

    @pl.when(k == pl.num_programs(1) - 1)
    def _():
        h = jnp.maximum(acc_ref[...] + b1_ref[...], 0.0)
        # dropout (p=0.2) == identity in eval mode
        h = jnp.dot(h.astype(compute_dtype), wfc_ref[...],
                    preferred_element_type=jnp.float32) + bfc_ref[...]
        h = jnp.maximum(h, 0.0)
        # dropout (p=0.2) == identity in eval mode
        hw2_ref[...] = jnp.dot(h.astype(compute_dtype), w2_ref[...],
                               preferred_element_type=jnp.float32
                               ).astype(hw2_ref.dtype)


# --------------------------------------------------------------------------
# Kernel 2: z = A @ HW2 + b2 ; out = log_softmax(z) over the real classes.
# HW2 is either fully VMEM-resident (sliced by k) or streamed per k-block.
# --------------------------------------------------------------------------
def _layer2_kernel(a_ref, hw2_ref, b2_ref, o_ref, acc_ref, *, out_size, tk,
                   hw2_resident):
    k = pl.program_id(1)

    @pl.when(k == 0)
    def _():
        acc_ref[...] = jnp.zeros_like(acc_ref)

    if hw2_resident:
        start = pl.multiple_of(k * tk, tk)
        hw2_k = hw2_ref[pl.ds(start, tk), :]
    else:
        hw2_k = hw2_ref[...]

    acc_ref[...] += jnp.dot(a_ref[...], hw2_k,
                            preferred_element_type=jnp.float32)

    @pl.when(k == pl.num_programs(1) - 1)
    def _():
        z = acc_ref[...] + b2_ref[...]
        # Mask padded class lanes so they drop out of max and exp-sum; the
        # stored padded lanes are zero-filled (no -inf left in the buffer).
        lane = lax.broadcasted_iota(jnp.int32, z.shape, 1)
        valid = lane < out_size
        z = jnp.where(valid, z, -jnp.inf)
        m = jnp.max(z, axis=1, keepdims=True)
        s = z - m
        lse = jnp.log(jnp.sum(jnp.exp(s), axis=1, keepdims=True))
        o_ref[...] = jnp.where(valid, s - lse, 0.0)


# --------------------------------------------------------------------------
# Wrapper: pad to TPU-friendly shapes, run the two tiled passes, slice back.
# tm / tk must be power-of-two multiples of 128 (defaults: 256 / 512).
# --------------------------------------------------------------------------
def gcn_forward_pallas(a_hat, x, w1, b1, wfc_t, bfc, w2, b2, *,
                       tm=256, tk=512, compute_dtype=jnp.bfloat16):
    n, f = x.shape
    hid = w1.shape[1]
    out = w2.shape[1]

    f_pad = _round_up(f, 128)
    h_pad = _round_up(hid, 128)
    o_pad = _round_up(out, 128)

    # Adaptive node tiling: small graphs collapse to a single tile (no
    # re-streaming); otherwise n is padded to a multiple of max(tm, tk) so
    # both tile sizes divide n_pad (tm/tk are power-of-two multiples of 128).
    n128 = _round_up(n, 128)
    if n128 <= max(tm, tk):
        tm = tk = n128
    n_pad = _round_up(n, max(tm, tk))

    cd = compute_dtype
    f32 = jnp.float32
    itemsize = jnp.dtype(cd).itemsize

    # Padded operands, built directly in compute_dtype (single HBM copy of A).
    a_p = jnp.zeros((n_pad, n_pad), cd).at[:n, :n].set(a_hat.astype(cd))
    wfc_p = jnp.zeros((h_pad, h_pad), cd).at[:hid, :hid].set(wfc_t.astype(cd))
    w2_p = jnp.zeros((h_pad, o_pad), cd).at[:hid, :out].set(w2.astype(cd))
    b1_p = jnp.zeros((1, h_pad), f32).at[:, :hid].set(
        b1.reshape(1, hid).astype(f32))
    bfc_p = jnp.zeros((1, h_pad), f32).at[:, :hid].set(
        bfc.reshape(1, hid).astype(f32))
    b2_p = jnp.zeros((1, o_pad), f32).at[:, :out].set(
        b2.reshape(1, out).astype(f32))

    # Hoisted XW1 = X @ W1: computed once in f32 (O(N*F*H), tiny vs A-matmuls),
    # cast a single time to compute_dtype.
    x_p = jnp.zeros((n_pad, f_pad), f32).at[:n, :f].set(x.astype(f32))
    w1_p = jnp.zeros((f_pad, h_pad), f32).at[:f, :hid].set(w1.astype(f32))
    xw1_p = jnp.dot(x_p, w1_p, preferred_element_type=f32).astype(cd)

    gm, gk = n_pad // tm, n_pad // tk
    grid = (gm, gk)

    # Keep HW2 fully VMEM-resident in pass 2 when it fits a small budget
    # (counting a conservative 2x for buffering), otherwise stream per k-step.
    hw2_resident = (2 * n_pad * o_pad * itemsize) <= (8 * 2**20)

    # VMEM budget (double-buffered streamed tiles + f32 accumulators +
    # resident HW2); stays well under 32 MiB at the defaults.  Capped at
    # 64 MiB (v7x physical VMEM) — raise only when actually needed (v6e/v5e
    # have 128 MiB physical).
    vmem_need = (
        2 * tm * tk * itemsize
        + 2 * tk * h_pad * itemsize
        + 2 * (h_pad * h_pad + h_pad * o_pad) * itemsize
        + 2 * tm * o_pad * max(itemsize, 4)
        + tm * h_pad * 4 + tm * o_pad * 4
        + (2 * n_pad * o_pad * itemsize if hw2_resident
           else 2 * tk * o_pad * itemsize)
    )
    vmem_limit = int(min(max(2 * vmem_need, 32 * 2**20), 64 * 2**20))

    cparams = pltpu.CompilerParams(
        dimension_semantics=("parallel", "arbitrary"),
        vmem_limit_bytes=vmem_limit,
    )

    # ---------------- pass 1: HW2 = f(A, XW1) ----------------
    cost1 = pl.CostEstimate(
        flops=int(2 * n_pad * n_pad * h_pad          # A @ XW1
                  + 2 * n_pad * h_pad * h_pad        # hidden Linear
                  + 2 * n_pad * h_pad * o_pad),      # @ W2
        transcendentals=0,
        bytes_accessed=int(
            itemsize * (n_pad * n_pad                # A, read once
                        + gm * n_pad * h_pad         # XW1, re-read per row tile
                        + h_pad * h_pad + h_pad * o_pad
                        + n_pad * o_pad)             # HW2 written
            + 4 * 2 * h_pad),                        # f32 biases
    )
    hw2 = pl.pallas_call(
        functools.partial(_layer1_kernel, compute_dtype=cd),
        out_shape=jax.ShapeDtypeStruct((n_pad, o_pad), cd),
        grid_spec=pltpu.PrefetchScalarGridSpec(
            num_scalar_prefetch=0,
            grid=grid,
            in_specs=[
                pl.BlockSpec((tm, tk), lambda i, k: (i, k)),         # A_hat
                pl.BlockSpec((tk, h_pad), lambda i, k: (k, 0)),      # XW1
                pl.BlockSpec((1, h_pad), lambda i, k: (0, 0)),       # b1
                pl.BlockSpec((h_pad, h_pad), lambda i, k: (0, 0)),   # Wfc^T
                pl.BlockSpec((1, h_pad), lambda i, k: (0, 0)),       # bfc
                pl.BlockSpec((h_pad, o_pad), lambda i, k: (0, 0)),   # W2
            ],
            out_specs=pl.BlockSpec((tm, o_pad), lambda i, k: (i, 0)),
            scratch_shapes=[pltpu.VMEM((tm, h_pad), jnp.float32)],
        ),
        compiler_params=cparams,
        cost_estimate=cost1,
    )(a_p, xw1_p, b1_p, wfc_p, bfc_p, w2_p)

    # ---------------- pass 2: log_softmax(A @ HW2 + b2) ----------------
    if hw2_resident:
        hw2_spec = pl.BlockSpec((n_pad, o_pad), lambda i, k: (0, 0))
        hw2_reads = 1
    else:
        hw2_spec = pl.BlockSpec((tk, o_pad), lambda i, k: (k, 0))
        hw2_reads = gm

    cost2 = pl.CostEstimate(
        flops=int(2 * n_pad * n_pad * o_pad),
        transcendentals=int(n_pad * o_pad),
        bytes_accessed=int(itemsize * (n_pad * n_pad
                                       + hw2_reads * n_pad * o_pad)
                           + 4 * (n_pad * o_pad + o_pad)),
    )
    out_p = pl.pallas_call(
        functools.partial(_layer2_kernel, out_size=out, tk=tk,
                          hw2_resident=hw2_resident),
        out_shape=jax.ShapeDtypeStruct((n_pad, o_pad), jnp.float32),
        grid_spec=pltpu.PrefetchScalarGridSpec(
            num_scalar_prefetch=0,
            grid=grid,
            in_specs=[
                pl.BlockSpec((tm, tk), lambda i, k: (i, k)),      # A_hat
                hw2_spec,                                          # HW2
                pl.BlockSpec((1, o_pad), lambda i, k: (0, 0)),     # b2
            ],
            out_specs=pl.BlockSpec((tm, o_pad), lambda i, k: (i, 0)),
            scratch_shapes=[pltpu.VMEM((tm, o_pad), jnp.float32)],
        ),
        compiler_params=cparams,
        cost_estimate=cost2,
    )(a_p, hw2, b2_p)

    return out_p[:n, :out]


# --------------------------------------------------------------------------
# Graph glue + pure-JAX reference
# --------------------------------------------------------------------------
def gcn_normalized_adjacency(edge_index, edge_weight, num_nodes):
    """Dense D^-1/2 (A + I) D^-1/2 matching PyG gcn_norm (add_self_loops=True)."""
    src = edge_index[0]
    dst = edge_index[1]
    if edge_weight is None:
        edge_weight = jnp.ones((edge_index.shape[1],), dtype=jnp.float32)
    a = jnp.zeros((num_nodes, num_nodes), dtype=jnp.float32)
    a = a.at[dst, src].add(edge_weight)                 # aggregate at dst
    a = a + jnp.eye(num_nodes, dtype=jnp.float32)       # self loops
    deg = jnp.sum(a, axis=1)
    dinv = jnp.where(deg > 0.0, 1.0 / jnp.sqrt(deg), 0.0)
    return dinv[:, None] * a * dinv[None, :]


def reference_forward(a_hat, x, w1, b1, wfc_t, bfc, w2, b2):
    h = jnp.maximum(a_hat @ (x @ w1) + b1, 0.0)
    h = jnp.maximum(h @ wfc_t + bfc, 0.0)
    z = a_hat @ (h @ w2) + b2
    return jax.nn.log_softmax(z, axis=1)


def _make_problem(key, num_nodes, input_size, hidden_size, output_size,
                  num_edges):
    keys = jax.random.split(key, 10)
    (k_x, k_src, k_dst, k_ew, k_w1, k_b1, k_wfc, k_bfc, k_w2, k_b2) = keys
    x = jax.random.normal(k_x, (num_nodes, input_size), dtype=jnp.float32)
    edge_index = jnp.stack([
        jax.random.randint(k_src, (num_edges,), 0, num_nodes),
        jax.random.randint(k_dst, (num_edges,), 0, num_nodes),
    ]).astype(jnp.int32)
    edge_weight = jax.random.uniform(k_ew, (num_edges,), dtype=jnp.float32,
                                     minval=0.5, maxval=1.5)
    w1 = jax.random.normal(k_w1, (input_size, hidden_size), jnp.float32) * 0.1
    b1 = (jax.random.normal(k_b1, (hidden_size,), jnp.float32) * 0.1
          ).reshape(1, hidden_size)
    # nn.Linear stores weight as (out, in); keep transposed (in, out).
    wfc_t = jax.random.normal(k_wfc, (hidden_size, hidden_size),
                              jnp.float32) * 0.1
    bfc = (jax.random.normal(k_bfc, (hidden_size,), jnp.float32) * 0.1
           ).reshape(1, hidden_size)
    w2 = jax.random.normal(k_w2, (hidden_size, output_size), jnp.float32) * 0.1
    b2 = (jax.random.normal(k_b2, (output_size,), jnp.float32) * 0.1
          ).reshape(1, output_size)
    a_hat = gcn_normalized_adjacency(edge_index, edge_weight, num_nodes)
    return a_hat, x, w1, b1, wfc_t, bfc, w2, b2


if __name__ == "__main__":
    key = jax.random.PRNGKey(0)
    k_small, k_big = jax.random.split(key)

    # --- small case (16 nodes, input=8, hidden=32, output=8), f32 path ---
    args_s = _make_problem(k_small, num_nodes=16, input_size=8,
                           hidden_size=32, output_size=8, num_edges=40)
    out_s = gcn_forward_pallas(*args_s, compute_dtype=jnp.float32)
    out_s = jax.block_until_ready(out_s)
    ref_s = reference_forward(*args_s)
    assert out_s.shape == (16, 8)
    assert jnp.allclose(out_s, ref_s, atol=1e-5, rtol=1e-5), \
        "small-case mismatch vs JAX reference"

    # --- multi-tile case: force 128 tiles to exercise the (3,3) reduction
    #     grid, accumulator init/finalize, and the resident-HW2 k-slicing ---
    args_b = _make_problem(k_big, num_nodes=300, input_size=12,
                           hidden_size=48, output_size=10, num_edges=2400)
    out_b = gcn_forward_pallas(*args_b, tm=128, tk=128,
                               compute_dtype=jnp.float32)
    out_b = jax.block_until_ready(out_b)
    ref_b = reference_forward(*args_b)
    assert out_b.shape == (300, 10)
    assert jnp.allclose(out_b, ref_b, atol=1e-4, rtol=1e-4), \
        "multi-tile case mismatch vs JAX reference"

    # --- default config: bf16 matmuls (f32 accumulation / softmax),
    #     adaptive single-tile path, loose tolerance ---
    out_bf = gcn_forward_pallas(*args_b)
    out_bf = jax.block_until_ready(out_bf)
    assert out_bf.shape == (300, 10)
    assert bool(jnp.all(jnp.isfinite(out_bf)))
    assert float(jnp.max(jnp.abs(out_bf - ref_b))) < 0.25, \
        "bf16 path diverged from f32 reference"

    print("KERNEL_OK")
</pallas_src>

<mosaic_0001>
module attributes {stable_mosaic.version = 11 : i64} {
  func.func @_layer1_kernel(%arg0: i32, %arg1: i32, %arg2: memref<128x128xf32, #tpu.memory_space<vmem>>, %arg3: memref<128x128xf32, #tpu.memory_space<vmem>>, %arg4: memref<1x128xf32, #tpu.memory_space<vmem>>, %arg5: memref<128x128xf32, #tpu.memory_space<vmem>>, %arg6: memref<1x128xf32, #tpu.memory_space<vmem>>, %arg7: memref<128x128xf32, #tpu.memory_space<vmem>>, %arg8: memref<128x128xf32, #tpu.memory_space<vmem>>, %arg9: memref<128x128xf32, #tpu.memory_space<vmem>>) attributes {dimension_semantics = [#tpu.dimension_semantics<parallel>, #tpu.dimension_semantics<arbitrary>], iteration_bounds = array<i64: 1, 1>, scalar_prefetch = 0 : i64, scratch_operands = 1 : i64, tpu.core_type = #tpu.core_type<tc>, window_params = [{transform_indices = @transform_0, window_bounds = array<i64: 128, 128>}, {transform_indices = @transform_1, window_bounds = array<i64: 128, 128>}, {pipeline_mode = #tpu.pipeline_mode<synchronous>, transform_indices = @transform_2, window_bounds = array<i64: 1, 128>}, {pipeline_mode = #tpu.pipeline_mode<synchronous>, transform_indices = @transform_3, window_bounds = array<i64: 128, 128>}, {pipeline_mode = #tpu.pipeline_mode<synchronous>, transform_indices = @transform_4, window_bounds = array<i64: 1, 128>}, {pipeline_mode = #tpu.pipeline_mode<synchronous>, transform_indices = @transform_5, window_bounds = array<i64: 128, 128>}, {transform_indices = @transform_6, window_bounds = array<i64: 128, 128>}]} {
    %c0_i32 = arith.constant 0 : i32
    %0 = arith.cmpi eq, %arg1, %c0_i32 : i32
    %1 = arith.extui %0 : i1 to i32
    %c0_i32_0 = arith.constant 0 : i32
    %2 = arith.cmpi ne, %1, %c0_i32_0 : i32
    scf.if %2 {
      %cst_10 = arith.constant 0.000000e+00 : f32
      %12 = vector.broadcast %cst_10 : f32 to vector<128x128xf32>
      %c0_11 = arith.constant 0 : index
      %c0_12 = arith.constant 0 : index
      %13 = vector.load %arg9[%c0_11, %c0_12] : memref<128x128xf32, #tpu.memory_space<vmem>>, vector<128x128xf32>
      tpu.vector_store %arg9[%c0_11, %c0_12], %12 {strides = array<i32>} : memref<128x128xf32, #tpu.memory_space<vmem>>, vector<128x128xf32>,
    } else {
    }
    %c0 = arith.constant 0 : index
    %c0_1 = arith.constant 0 : index
    %3 = vector.load %arg9[%c0, %c0_1] : memref<128x128xf32, #tpu.memory_space<vmem>>, vector<128x128xf32>
    %c0_2 = arith.constant 0 : index
    %c0_3 = arith.constant 0 : index
    %4 = vector.load %arg2[%c0_2, %c0_3] : memref<128x128xf32, #tpu.memory_space<vmem>>, vector<128x128xf32>
    %c0_4 = arith.constant 0 : index
    %c0_5 = arith.constant 0 : index
    %5 = vector.load %arg3[%c0_4, %c0_5] : memref<128x128xf32, #tpu.memory_space<vmem>>, vector<128x128xf32>
    %cst = arith.constant dense<0.000000e+00> : vector<128x128xf32>
    %6 = tpu.matmul %4, %5, %cst {dimension_numbers = #tpu.dot_dimension_numbers<[1], [0], [0], [1], [0, 0, 1, 1], [], []>} : vector<128x128xf32>, vector<128x128xf32>, vector<128x128xf32> -> vector<128x128xf32>
    %7 = arith.addf %3, %6 : vector<128x128xf32>
    %c0_6 = arith.constant 0 : index
    %c0_7 = arith.constant 0 : index
    %8 = vector.load %arg9[%c0_6, %c0_7] : memref<128x128xf32, #tpu.memory_space<vmem>>, vector<128x128xf32>
    tpu.vector_store %arg9[%c0_6, %c0_7], %7 {strides = array<i32>} : memref<128x128xf32, #tpu.memory_space<vmem>>, vector<128x128xf32>,
    %c0_i32_8 = arith.constant 0 : i32
    %9 = arith.cmpi eq, %arg1, %c0_i32_8 : i32
    %10 = arith.extui %9 : i1 to i32
    %c0_i32_9 = arith.constant 0 : i32
    %11 = arith.cmpi ne, %10, %c0_i32_9 : i32
    scf.if %11 {
      %c0_10 = arith.constant 0 : index
      %c0_11 = arith.constant 0 : index
      %12 = vector.load %arg9[%c0_10, %c0_11] : memref<128x128xf32, #tpu.memory_space<vmem>>, vector<128x128xf32>
      %c0_12 = arith.constant 0 : index
      %c0_13 = arith.constant 0 : index
      %13 = vector.load %arg4[%c0_12, %c0_13] : memref<1x128xf32, #tpu.memory_space<vmem>>, vector<1x128xf32>
      %14 = vector.broadcast %13 : vector<1x128xf32> to vector<128x128xf32>
      %15 = arith.addf %12, %14 : vector<128x128xf32>
      %cst_14 = arith.constant 0.000000e+00 : f32
      %16 = vector.broadcast %cst_14 : f32 to vector<128x128xf32>
      %17 = arith.maximumf %15, %16 : vector<128x128xf32>
      %c0_15 = arith.constant 0 : index
      %c0_16 = arith.constant 0 : index
      %18 = vector.load %arg5[%c0_15, %c0_16] : memref<128x128xf32, #tpu.memory_space<vmem>>, vector<128x128xf32>
      %cst_17 = arith.constant dense<0.000000e+00> : vector<128x128xf32>
      %19 = tpu.matmul %17, %18, %cst_17 {dimension_numbers = #tpu.dot_dimension_numbers<[1], [0], [0], [1], [0, 0, 1, 1], [], []>} : vector<128x128xf32>, vector<128x128xf32>, vector<128x128xf32> -> vector<128x128xf32>
      %c0_18 = arith.constant 0 : index
      %c0_19 = arith.constant 0 : index
      %20 = vector.load %arg6[%c0_18, %c0_19] : memref<1x128xf32, #tpu.memory_space<vmem>>, vector<1x128xf32>
      %21 = vector.broadcast %20 : vector<1x128xf32> to vector<128x128xf32>
      %22 = arith.addf %19, %21 : vector<128x128xf32>
      %cst_20 = arith.constant 0.000000e+00 : f32
      %23 = vector.broadcast %cst_20 : f32 to vector<128x128xf32>
      %24 = arith.maximumf %22, %23 : vector<128x128xf32>
      %c0_21 = arith.constant 0 : index
      %c0_22 = arith.constant 0 : index
      %25 = vector.load %arg7[%c0_21, %c0_22] : memref<128x128xf32, #tpu.memory_space<vmem>>, vector<128x128xf32>
      %cst_23 = arith.constant dense<0.000000e+00> : vector<128x128xf32>
      %26 = tpu.matmul %24, %25, %cst_23 {dimension_numbers = #tpu.dot_dimension_numbers<[1], [0], [0], [1], [0, 0, 1, 1], [], []>} : vector<128x128xf32>, vector<128x128xf32>, vector<128x128xf32> -> vector<128x128xf32>
      %c0_24 = arith.constant 0 : index
      %c0_25 = arith.constant 0 : index
      %27 = vector.load %arg8[%c0_24, %c0_25] : memref<128x128xf32, #tpu.memory_space<vmem>>, vector<128x128xf32>
      tpu.vector_store %arg8[%c0_24, %c0_25], %26 {strides = array<i32>} : memref<128x128xf32, #tpu.memory_space<vmem>>, vector<128x128xf32>,
    } else {
    }
    return
  }
  func.func @transform_0(%arg0: i32, %arg1: i32) -> (i32, i32) {
    %c0_i32 = arith.constant 0 : i32
    return %arg0, %arg1 : i32, i32
  }
  func.func @transform_1(%arg0: i32, %arg1: i32) -> (i32, i32) {
    %c0_i32 = arith.constant 0 : i32
    %c0_i32_0 = arith.constant 0 : i32
    return %arg1, %c0_i32 : i32, i32
  }
  func.func @transform_2(%arg0: i32, %arg1: i32) -> (i32, i32) {
    %c0_i32 = arith.constant 0 : i32
    %c0_i32_0 = arith.constant 0 : i32
    %c0_i32_1 = arith.constant 0 : i32
    return %c0_i32, %c0_i32_0 : i32, i32
  }
  func.func @transform_3(%arg0: i32, %arg1: i32) -> (i32, i32) {
    %c0_i32 = arith.constant 0 : i32
    %c0_i32_0 = arith.constant 0 : i32
    %c0_i32_1 = arith.constant 0 : i32
    return %c0_i32, %c0_i32_0 : i32, i32
  }
  func.func @transform_4(%arg0: i32, %arg1: i32) -> (i32, i32) {
    %c0_i32 = arith.constant 0 : i32
    %c0_i32_0 = arith.constant 0 : i32
    %c0_i32_1 = arith.constant 0 : i32
    return %c0_i32, %c0_i32_0 : i32, i32
  }
  func.func @transform_5(%arg0: i32, %arg1: i32) -> (i32, i32) {
    %c0_i32 = arith.constant 0 : i32
    %c0_i32_0 = arith.constant 0 : i32
    %c0_i32_1 = arith.constant 0 : i32
    return %c0_i32, %c0_i32_0 : i32, i32
  }
  func.func @transform_6(%arg0: i32, %arg1: i32) -> (i32, i32) {
    %c0_i32 = arith.constant 0 : i32
    %c0_i32_0 = arith.constant 0 : i32
    return %arg0, %c0_i32 : i32, i32
  }
}

</mosaic_0001>

<llo_original>
// kernel: tpu_custom_call.1
$region0: #{tpu_custom_call.1}
  #allocation0 [shape = 'u32[]', space=smem, size = 0x4, offset = 0x4, fixed_abs, tag = 'smem constant byte address 0x4 - core index']
  #allocation1 [shape = 'u32[144,128]{1,0:T(1,128)}', space=vmem, size = 0x12000, scoped, tag = 'internal scratch']
  #allocation2 [shape = 'f32[128,128]{1,0:T(8,128)}', space=vmem, size = 0x10000, scoped, tag = 'scratch operand']
  %s0 = inlined_call_operand.hbm [shape: f32[128,128], index: 0, kind: input, shape index: {}]
  %s1 = inlined_call_operand.hbm [shape: f32[128,128], index: 1, kind: input, shape index: {}]
  %s2 = inlined_call_operand.vmem [shape: f32[1,128], index: 2, kind: input, shape index: {}]
  %s3 = inlined_call_operand.hbm [shape: f32[128,128], index: 3, kind: input, shape index: {}]
  %s4 = inlined_call_operand.vmem [shape: f32[1,128], index: 4, kind: input, shape index: {}]
  %s5 = inlined_call_operand.hbm [shape: f32[128,128], index: 5, kind: input, shape index: {}]
  %s6 = inlined_call_operand.hbm [shape: f32[128,128], index: 6, kind: output, shape index: {}]
  %s7 = sld [smem:[#allocation0]]
  $region58: #{tpu_custom_call.1} parent=0
    _
  %s9 = ssub.s32 1, %s7
  %s10 = scalar_select 0, %s9, %s7
  $region1: #{tpu_custom_call.1} parent=0
    #allocation3 [shape = 'u8[65536]{0}', space=vmem, size = 0x10000, scoped, tag = 'input window, operand 0, single buffered']
    #allocation4 [shape = 's32[1]{0}', space=sflag, size = 0x4, scoped, tag = 'scoped memory for tpu_custom_call.1']
    #allocation5 [shape = 's32[1]{0}', space=sflag, size = 0x4, scoped, tag = 'scoped memory for tpu_custom_call.1']
    #allocation6 [shape = 'u8[65536]{0}', space=vmem, size = 0x10000, scoped, tag = 'input window, operand 1, single buffered']
    #allocation7 [shape = 's32[1]{0}', space=sflag, size = 0x4, scoped, tag = 'scoped memory for tpu_custom_call.1']
    #allocation8 [shape = 'u8[65536]{0}', space=vmem, size = 0x10000, scoped, tag = 'input window, operand 3, single buffered']
    #allocation9 [shape = 'u8[65536]{0}', space=vmem, size = 0x10000, scoped, tag = 'input window, operand 5, single buffered']
    #allocation10 [shape = 's32[1]{0}', space=sflag, size = 0x4, scoped, tag = 'scoped memory for tpu_custom_call.1']
    #allocation11 [shape = 'u8[65536]{0}', space=vmem, size = 0x10000, scoped, tag = 'output window, operand 0, single buffered']
    %11 = vsyncpa [#allocation4], 0
    %12 = vsyncpa [#allocation7], 0
    %13 = vsyncpa [#allocation10], 0
    %14 = vsyncpa [#allocation5], 0
    // Predicated region
    $region2: #{tpu_custom_call.1} parent=1 // pred_check
      _
    $region3: #{tpu_custom_call.1} parent=1 // pred_check_branch
      %16 = sbr.rel (0) target = $region5
    $region4: #{tpu_custom_call.1} parent=1 // pred_region
      %s18 = ssub.s32 2048, 2048
      %19 = vsyncadd [#allocation4], %s18
      %s20 = sshll.u32 [#allocation3], 4
      %s21 = int_to_ptr.vmem [resolvable:$true] %s20
      %26 = dma.hbm_to_vmem [thread:$0]  %s0, 2048, %s21, [#allocation4], 128, 128, 8
    $region5: #{tpu_custom_call.1} parent=1 // pred_fallthru
      _
    // Predicated region
    $region6: #{tpu_custom_call.1} parent=1 // pred_check
      _
    $region7: #{tpu_custom_call.1} parent=1 // pred_check_branch
      %28 = sbr.rel (0) target = $region9
    $region8: #{tpu_custom_call.1} parent=1 // pred_region
      %s30 = ssub.s32 2048, 2048
      %31 = vsyncadd [#allocation7], %s30
      %s32 = sshll.u32 [#allocation6], 4
      %s33 = int_to_ptr.vmem [resolvable:$true] %s32
      %38 = dma.hbm_to_vmem [thread:$0]  %s1, 2048, %s33, [#allocation7], 128, 128, 8
    $region9: #{tpu_custom_call.1} parent=1 // pred_fallthru
      _
    // Predicated region
    $region10: #{tpu_custom_call.1} parent=1 // pred_check
      _
    $region11: #{tpu_custom_call.1} parent=1 // pred_check_branch
      %40 = sbr.rel (0) target = $region13
    $region12: #{tpu_custom_call.1} parent=1 // pred_region
      _
    $region13: #{tpu_custom_call.1} parent=1 // pred_fallthru
      _
    // Predicated region
    $region14: #{tpu_custom_call.1} parent=1 // pred_check
      _
    $region15: #{tpu_custom_call.1} parent=1 // pred_check_branch
      %42 = sbr.rel (0) target = $region17
    $region16: #{tpu_custom_call.1} parent=1 // pred_region
      %s44 = ssub.s32 2048, 2048
      %45 = vsyncadd [#allocation7], %s44
      %s46 = sshll.u32 [#allocation8], 4
      %s47 = int_to_ptr.vmem [resolvable:$true] %s46
      %52 = dma.hbm_to_vmem [thread:$0]  %s3, 2048, %s47, [#allocation7], 128, 128, 8
    $region17: #{tpu_custom_call.1} parent=1 // pred_fallthru
      _
    // Predicated region
    $region18: #{tpu_custom_call.1} parent=1 // pred_check
      _
    $region19: #{tpu_custom_call.1} parent=1 // pred_check_branch
      %54 = sbr.rel (0) target = $region21
    $region20: #{tpu_custom_call.1} parent=1 // pred_region
      _
    $region21: #{tpu_custom_call.1} parent=1 // pred_fallthru
      _
    // Predicated region
    $region22: #{tpu_custom_call.1} parent=1 // pred_check
      _
    $region23: #{tpu_custom_call.1} parent=1 // pred_check_branch
      %56 = sbr.rel (0) target = $region25
    $region24: #{tpu_custom_call.1} parent=1 // pred_region
      %s58 = ssub.s32 2048, 2048
      %59 = vsyncadd [#allocation10], %s58
      %s60 = sshll.u32 [#allocation9], 4
      %s61 = int_to_ptr.vmem [resolvable:$true] %s60
      %66 = dma.hbm_to_vmem [thread:$0]  %s5, 2048, %s61, [#allocation10], 128, 128, 8
    $region25: #{tpu_custom_call.1} parent=1 // pred_fallthru
      _
    // Predicated region
    $region26: #{tpu_custom_call.1} parent=1 // pred_check
      _
    $region27: #{tpu_custom_call.1} parent=1 // pred_check_branch
      %68 = sbr.rel (0) target = $region29
    $region28: #{tpu_custom_call.1} parent=1 // pred_region
      %69 = dma.done [#allocation4], 2048
    $region29: #{tpu_custom_call.1} parent=1 // pred_fallthru
      _
    // Predicated region
    $region30: #{tpu_custom_call.1} parent=1 // pred_check
      _
    $region31: #{tpu_custom_call.1} parent=1 // pred_check_branch
      %71 = sbr.rel (0) target = $region33
    $region32: #{tpu_custom_call.1} parent=1 // pred_region
      %72 = dma.done [#allocation7], 2048
    $region33: #{tpu_custom_call.1} parent=1 // pred_fallthru
      _
    // Predicated region
    $region34: #{tpu_custom_call.1} parent=1 // pred_check
      _
    $region35: #{tpu_custom_call.1} parent=1 // pred_check_branch
      %74 = sbr.rel (0) target = $region37
    $region36: #{tpu_custom_call.1} parent=1 // pred_region
      %75 = dma.done [#allocation7], 2048
    $region37: #{tpu_custom_call.1} parent=1 // pred_fallthru
      _
    // Predicated region
    $region38: #{tpu_custom_call.1} parent=1 // pred_check
      _
    $region39: #{tpu_custom_call.1} parent=1 // pred_check_branch
      %77 = sbr.rel (0) target = $region41
    $region40: #{tpu_custom_call.1} parent=1 // pred_region
      %78 = dma.done [#allocation10], 2048
    $region41: #{tpu_custom_call.1} parent=1 // pred_fallthru
      _
    %p79 = scmp.eq.s32.totalorder 0, 0
    // Predicated region
    $region42: #{tpu_custom_call.1} parent=1 // pred_check
      %p80 = pneg %p79
    $region43: #{tpu_custom_call.1} parent=1 // pred_check_branch
      %82 = sbr.rel (%p80) target = $region45
    $region44: #{tpu_custom_call.1} parent=1 // pred_region
      %83 = vst [vmem:[#allocation2] sm:$0xff] 0.0
      %84 = vst [vmem:[#allocation2 + $0x8] sm:$0xff] 0.0
      %85 = vst [vmem:[#allocation2 + $0x10] sm:$0xff] 0.0
      %86 = vst [vmem:[#allocation2 + $0x18] sm:$0xff] 0.0
      %87 = vst [vmem:[#allocation2 + $0x20] sm:$0xff] 0.0
      %88 = vst [vmem:[#allocation2 + $0x28] sm:$0xff] 0.0
      %89 = vst [vmem:[#allocation2 + $0x30] sm:$0xff] 0.0
      %90 = vst [vmem:[#allocation2 + $0x38] sm:$0xff] 0.0
      %91 = vst [vmem:[#allocation2 + $0x40] sm:$0xff] 0.0
      %92 = vst [vmem:[#allocation2 + $0x48] sm:$0xff] 0.0
      %93 = vst [vmem:[#allocation2 + $0x50] sm:$0xff] 0.0
      %94 = vst [vmem:[#allocation2 + $0x58] sm:$0xff] 0.0
      %95 = vst [vmem:[#allocation2 + $0x60] sm:$0xff] 0.0
      %96 = vst [vmem:[#allocation2 + $0x68] sm:$0xff] 0.0
      %97 = vst [vmem:[#allocation2 + $0x70] sm:$0xff] 0.0
      %98 = vst [vmem:[#allocation2 + $0x78] sm:$0xff] 0.0
    $region45: #{tpu_custom_call.1} parent=1 // pred_fallthru
      _
    %v99 = vld [vmem:[#allocation2] sm:$0xff]
    %v100 = vld [vmem:[#allocation2 + $0x8] sm:$0xff]
    %v101 = vld [vmem:[#allocation2 + $0x10] sm:$0xff]
    %v102 = vld [vmem:[#allocation2 + $0x18] sm:$0xff]
    %v103 = vld [vmem:[#allocation2 + $0x20] sm:$0xff]
    %v104 = vld [vmem:[#allocation2 + $0x28] sm:$0xff]
    %v105 = vld [vmem:[#allocation2 + $0x30] sm:$0xff]
    %v106 = vld [vmem:[#allocation2 + $0x38] sm:$0xff]
    %v107 = vld [vmem:[#allocation2 + $0x40] sm:$0xff]
    %v108 = vld [vmem:[#allocation2 + $0x48] sm:$0xff]
    %v109 = vld [vmem:[#allocation2 + $0x50] sm:$0xff]
    %v110 = vld [vmem:[#allocation2 + $0x58] sm:$0xff]
    %v111 = vld [vmem:[#allocation2 + $0x60] sm:$0xff]
    %v112 = vld [vmem:[#allocation2 + $0x68] sm:$0xff]
    %v113 = vld [vmem:[#allocation2 + $0x70] sm:$0xff]
    %v114 = vld [vmem:[#allocation2 + $0x78] sm:$0xff]
    %v115 = vld [vmem:[#allocation3] sm:$0xff]
    %v116 = vld [vmem:[#allocation3 + $0x8] sm:$0xff]
    %v117 = vld [vmem:[#allocation3 + $0x10] sm:$0xff]
    %v118 = vld [vmem:[#allocation3 + $0x18] sm:$0xff]
    %v119 = vld [vmem:[#allocation3 + $0x20] sm:$0xff]
    %v120 = vld [vmem:[#allocation3 + $0x28] sm:$0xff]
    %v121 = vld [vmem:[#allocation3 + $0x30] sm:$0xff]
    %v122 = vld [vmem:[#allocation3 + $0x38] sm:$0xff]
    %v123 = vld [vmem:[#allocation3 + $0x40] sm:$0xff]
    %v124 = vld [vmem:[#allocation3 + $0x48] sm:$0xff]
    %v125 = vld [vmem:[#allocation3 + $0x50] sm:$0xff]
    %v126 = vld [vmem:[#allocation3 + $0x58] sm:$0xff]
    %v127 = vld [vmem:[#allocation3 + $0x60] sm:$0xff]
    %v128 = vld [vmem:[#allocation3 + $0x68] sm:$0xff]
    %v129 = vld [vmem:[#allocation3 + $0x70] sm:$0xff]
    %v130 = vld [vmem:[#allocation3 + $0x78] sm:$0xff]
    %v131 = vld [vmem:[#allocation6] sm:$0xff]
    %v132 = vld [vmem:[#allocation6 + $0x8] sm:$0xff]
    %v133 = vld [vmem:[#allocation6 + $0x10] sm:$0xff]
    %v134 = vld [vmem:[#allocation6 + $0x18] sm:$0xff]
    %v135 = vld [vmem:[#allocation6 + $0x20] sm:$0xff]
    %v136 = vld [vmem:[#allocation6 + $0x28] sm:$0xff]
    %v137 = vld [vmem:[#allocation6 + $0x30] sm:$0xff]
    %v138 = vld [vmem:[#allocation6 + $0x38] sm:$0xff]
    %v139 = vld [vmem:[#allocation6 + $0x40] sm:$0xff]
    %v140 = vld [vmem:[#allocation6 + $0x48] sm:$0xff]
    %v141 = vld [vmem:[#allocation6 + $0x50] sm:$0xff]
    %v142 = vld [vmem:[#allocation6 + $0x58] sm:$0xff]
    %v143 = vld [vmem:[#allocation6 + $0x60] sm:$0xff]
    %v144 = vld [vmem:[#allocation6 + $0x68] sm:$0xff]
    %v145 = vld [vmem:[#allocation6 + $0x70] sm:$0xff]
    %v146 = vld [vmem:[#allocation6 + $0x78] sm:$0xff]
    %147 = vmatprep.subr.mxu0 0.0
    %148 = vmatpush1.msra.mxu0 %v131
    %149 = vmatprep.subr.mxu0 0.0
    %150 = vmatpush1.msra.mxu0 %v132
    %151 = vmatprep.subr.mxu0 0.0
    %152 = vmatpush1.msra.mxu0 %v133
    %153 = vmatprep.subr.mxu0 0.0
    %154 = vmatpush1.msra.mxu0 %v134
    %155 = vmatprep.subr.mxu0 0.0
    %156 = vmatpush1.msra.mxu0 %v135
    %157 = vmatprep.subr.mxu0 0.0
    %158 = vmatpush1.msra.mxu0 %v136
    %159 = vmatprep.subr.mxu0 0.0
    %160 = vmatpush1.msra.mxu0 %v137
    %161 = vmatprep.subr.mxu0 0.0
    %162 = vmatpush1.msra.mxu0 %v138
    %163 = vmatprep.subr.mxu0 0.0
    %164 = vmatpush1.msra.mxu0 %v139
    %165 = vmatprep.subr.mxu0 0.0
    %166 = vmatpush1.msra.mxu0 %v140
    %167 = vmatprep.subr.mxu0 0.0
    %168 = vmatpush1.msra.mxu0 %v141
    %169 = vmatprep.subr.mxu0 0.0
    %170 = vmatpush1.msra.mxu0 %v142
    %171 = vmatprep.subr.mxu0 0.0
    %172 = vmatpush1.msra.mxu0 %v143
    %173 = vmatprep.subr.mxu0 0.0
    %174 = vmatpush1.msra.mxu0 %v144
    %175 = vmatprep.subr.mxu0 0.0
    %176 = vmatpush1.msra.mxu0 %v145
    %177 = vmatprep.subr.mxu0 0.0
    %178 = vmatpush1.msra.mxu0 %v146
    %179 = vmatprep.subr.mxu0 0.0
    %180 = vmatpush1.msra.mxu0 0.0
    %181 = vmatprep.subr.mxu0 0.0
    %182 = vmatpush1.msra.mxu0 0.0
    %183 = vmatprep.subr.mxu0 0.0
    %184 = vmatpush1.msra.mxu0 0.0
    %185 = vmatprep.subr.mxu0 0.0
    %186 = vmatpush1.msra.mxu0 0.0
    %187 = vmatprep.subr.mxu0 0.0
    %188 = vmatpush1.msra.mxu0 0.0
    %189 = vmatprep.subr.mxu0 0.0
    %190 = vmatpush1.msra.mxu0 0.0
    %191 = vmatprep.subr.mxu0 0.0
    %192 = vmatpush1.msra.mxu0 0.0
    %193 = vmatprep.subr.mxu0 0.0
    %194 = vmatpush1.msra.mxu0 0.0
    %195 = vmatprep.subr.mxu0 0.0
    %196 = vmatpush1.msra.mxu0 0.0
    %197 = vmatprep.subr.mxu0 0.0
    %198 = vmatpush1.msra.mxu0 0.0
    %199 = vmatprep.subr.mxu0 0.0
    %200 = vmatpush1.msra.mxu0 0.0
    %201 = vmatprep.subr.mxu0 0.0
    %202 = vmatpush1.msra.mxu0 0.0
    %203 = vmatprep.subr.mxu0 0.0
    %204 = vmatpush1.msra.mxu0 0.0
    %205 = vmatprep.subr.mxu0 0.0
    %206 = vmatpush1.msra.mxu0 0.0
    %207 = vmatprep.subr.mxu0 0.0
    %208 = vmatpush1.msra.mxu0 0.0
    %209 = vmatprep.subr.mxu0 0.0
    %210 = vmatpush1.msra.mxu0 0.0
    %211 = vmatprep.mubr.f32.mxu0 0.0
    %212 = vmatmul.mubr.f32.gmra.mrb[0].mxu0 %v115
    %v213 = vpop.f32.mrb[0].mxu0
    %v214 = vadd.f32 0.0, %v213
    %v215 = vpop.f32.mrb[0].mxu0
    %216 = vmatprep.mubr.f32.mxu0 0.0
    %217 = vmatmul.mubr.f32.gmra.mrb[0].mxu0 %v116
    %v218 = vpop.f32.mrb[0].mxu0
    %v219 = vadd.f32 0.0, %v218
    %v220 = vpop.f32.mrb[0].mxu0
    %221 = vmatprep.mubr.f32.mxu0 0.0
    %222 = vmatmul.mubr.f32.gmra.mrb[0].mxu0 %v117
    %v223 = vpop.f32.mrb[0].mxu0
    %v224 = vadd.f32 0.0, %v223
    %v225 = vpop.f32.mrb[0].mxu0
    %226 = vmatprep.mubr.f32.mxu0 0.0
    %227 = vmatmul.mubr.f32.gmra.mrb[0].mxu0 %v118
    %v228 = vpop.f32.mrb[0].mxu0
    %v229 = vadd.f32 0.0, %v228
    %v230 = vpop.f32.mrb[0].mxu0
    %231 = vmatprep.mubr.f32.mxu0 0.0
    %232 = vmatmul.mubr.f32.gmra.mrb[0].mxu0 %v119
    %v233 = vpop.f32.mrb[0].mxu0
    %v234 = vadd.f32 0.0, %v233
    %v235 = vpop.f32.mrb[0].mxu0
    %236 = vmatprep.mubr.f32.mxu0 0.0
    %237 = vmatmul.mubr.f32.gmra.mrb[0].mxu0 %v120
    %v238 = vpop.f32.mrb[0].mxu0
    %v239 = vadd.f32 0.0, %v238
    %v240 = vpop.f32.mrb[0].mxu0
    %241 = vmatprep.mubr.f32.mxu0 0.0
    %242 = vmatmul.mubr.f32.gmra.mrb[0].mxu0 %v121
    %v243 = vpop.f32.mrb[0].mxu0
    %v244 = vadd.f32 0.0, %v243
    %v245 = vpop.f32.mrb[0].mxu0
    %246 = vmatprep.mubr.f32.mxu0 0.0
    %247 = vmatmul.mubr.f32.gmra.mrb[0].mxu0 %v122
    %v248 = vpop.f32.mrb[0].mxu0
    %v249 = vadd.f32 0.0, %v248
    %v250 = vpop.f32.mrb[0].mxu0
    %251 = vmatprep.mubr.f32.mxu0 0.0
    %252 = vmatmul.mubr.f32.gmra.mrb[0].mxu0 %v123
    %v253 = vpop.f32.mrb[0].mxu0
    %v254 = vadd.f32 0.0, %v253
    %v255 = vpop.f32.mrb[0].mxu0
    %256 = vmatprep.mubr.f32.mxu0 0.0
    %257 = vmatmul.mubr.f32.gmra.mrb[0].mxu0 %v124
    %v258 = vpop.f32.mrb[0].mxu0
    %v259 = vadd.f32 0.0, %v258
    %v260 = vpop.f32.mrb[0].mxu0
    %261 = vmatprep.mubr.f32.mxu0 0.0
    %262 = vmatmul.mubr.f32.gmra.mrb[0].mxu0 %v125
    %v263 = vpop.f32.mrb[0].mxu0
    %v264 = vadd.f32 0.0, %v263
    %v265 = vpop.f32.mrb[0].mxu0
    %266 = vmatprep.mubr.f32.mxu0 0.0
    %267 = vmatmul.mubr.f32.gmra.mrb[0].mxu0 %v126
    %v268 = vpop.f32.mrb[0].mxu0
    %v269 = vadd.f32 0.0, %v268
    %v270 = vpop.f32.mrb[0].mxu0
    %271 = vmatprep.mubr.f32.mxu0 0.0
    %272 = vmatmul.mubr.f32.gmra.mrb[0].mxu0 %v127
    %v273 = vpop.f32.mrb[0].mxu0
    %v274 = vadd.f32 0.0, %v273
    %v275 = vpop.f32.mrb[0].mxu0
    %276 = vmatprep.mubr.f32.mxu0 0.0
    %277 = vmatmul.mubr.f32.gmra.mrb[0].mxu0 %v128
    %v278 = vpop.f32.mrb[0].mxu0
    %v279 = vadd.f32 0.0, %v278
    %v280 = vpop.f32.mrb[0].mxu0
    %281 = vmatprep.mubr.f32.mxu0 0.0
    %282 = vmatmul.mubr.f32.gmra.mrb[0].mxu0 %v129
    %v283 = vpop.f32.mrb[0].mxu0
    %v284 = vadd.f32 0.0, %v283
    %v285 = vpop.f32.mrb[0].mxu0
    %286 = vmatprep.mubr.f32.mxu0 0.0
    %287 = vmatmul.mubr.f32.gmra.mrb[0].mxu0 %v130
    %v288 = vpop.f32.mrb[0].mxu0
    %v289 = vadd.f32 0.0, %v288
    %v290 = vpop.f32.mrb[0].mxu0
    %291 = vdwg.mxu0
    %v292 = vadd.f32 %v99, %v214
    %v293 = vadd.f32 %v100, %v219
    %v294 = vadd.f32 %v101, %v224
    %v295 = vadd.f32 %v102, %v229
    %v296 = vadd.f32 %v103, %v234
    %v297 = vadd.f32 %v104, %v239
    %v298 = vadd.f32 %v105, %v244
    %v299 = vadd.f32 %v106, %v249
    %v300 = vadd.f32 %v107, %v254
    %v301 = vadd.f32 %v108, %v259
    %v302 = vadd.f32 %v109, %v264
    %v303 = vadd.f32 %v110, %v269
    %v304 = vadd.f32 %v111, %v274
    %v305 = vadd.f32 %v112, %v279
    %v306 = vadd.f32 %v113, %v284
    %v307 = vadd.f32 %v114, %v289
    %308 = vst [vmem:[#allocation2] sm:$0xff] %v292
    %309 = vst [vmem:[#allocation2 + $0x8] sm:$0xff] %v293
    %310 = vst [vmem:[#allocation2 + $0x10] sm:$0xff] %v294
    %311 = vst [vmem:[#allocation2 + $0x18] sm:$0xff] %v295
    %312 = vst [vmem:[#allocation2 + $0x20] sm:$0xff] %v296
    %313 = vst [vmem:[#allocation2 + $0x28] sm:$0xff] %v297
    %314 = vst [vmem:[#allocation2 + $0x30] sm:$0xff] %v298
    %315 = vst [vmem:[#allocation2 + $0x38] sm:$0xff] %v299
    %316 = vst [vmem:[#allocation2 + $0x40] sm:$0xff] %v300
    %317 = vst [vmem:[#allocation2 + $0x48] sm:$0xff] %v301
    %318 = vst [vmem:[#allocation2 + $0x50] sm:$0xff] %v302
    %319 = vst [vmem:[#allocation2 + $0x58] sm:$0xff] %v303
    %320 = vst [vmem:[#allocation2 + $0x60] sm:$0xff] %v304
    %321 = vst [vmem:[#allocation2 + $0x68] sm:$0xff] %v305
    %322 = vst [vmem:[#allocation2 + $0x70] sm:$0xff] %v306
    %323 = vst [vmem:[#allocation2 + $0x78] sm:$0xff] %v307
    // Predicated region
    $region46: #{tpu_custom_call.1} parent=1 // pred_check
      %p324 = pneg %p79
    $region47: #{tpu_custom_call.1} parent=1 // pred_check_branch
      %326 = sbr.rel (%p324) target = $region49
    $region48: #{tpu_custom_call.1} parent=1 // pred_region
      %v327 = vld [vmem:[#allocation2] sm:$0xff]
      %v328 = vld [vmem:[#allocation2 + $0x8] sm:$0xff]
      %v329 = vld [vmem:[#allocation2 + $0x10] sm:$0xff]
      %v330 = vld [vmem:[#allocation2 + $0x18] sm:$0xff]
      %v331 = vld [vmem:[#allocation2 + $0x20] sm:$0xff]
      %v332 = vld [vmem:[#allocation2 + $0x28] sm:$0xff]
      %v333 = vld [vmem:[#allocation2 + $0x30] sm:$0xff]
      %v334 = vld [vmem:[#allocation2 + $0x38] sm:$0xff]
      %v335 = vld [vmem:[#allocation2 + $0x40] sm:$0xff]
      %v336 = vld [vmem:[#allocation2 + $0x48] sm:$0xff]
      %v337 = vld [vmem:[#allocation2 + $0x50] sm:$0xff]
      %v338 = vld [vmem:[#allocation2 + $0x58] sm:$0xff]
      %v339 = vld [vmem:[#allocation2 + $0x60] sm:$0xff]
      %v340 = vld [vmem:[#allocation2 + $0x68] sm:$0xff]
      %v341 = vld [vmem:[#allocation2 + $0x70] sm:$0xff]
      %v342 = vld [vmem:[#allocation2 + $0x78] sm:$0xff]
      %v343 = vld [vmem:[%s2] sm:$0x1]
      %v345 = vlaneseq
      %v346 = vshrl.u32 %v345, 7
      %v347 = vsub.s32 0, %v346
      %v348 = vrot.slane %v343, %v347
      %v350 = vadd.f32 %v327, %v348
      %v351 = vadd.f32 %v328, %v348
      %v352 = vadd.f32 %v329, %v348
      %v353 = vadd.f32 %v330, %v348
      %v354 = vadd.f32 %v331, %v348
      %v355 = vadd.f32 %v332, %v348
      %v356 = vadd.f32 %v333, %v348
      %v357 = vadd.f32 %v334, %v348
      %v358 = vadd.f32 %v335, %v348
      %v359 = vadd.f32 %v336, %v348
      %v360 = vadd.f32 %v337, %v348
      %v361 = vadd.f32 %v338, %v348
      %v362 = vadd.f32 %v339, %v348
      %v363 = vadd.f32 %v340, %v348
      %v364 = vadd.f32 %v341, %v348
      %v365 = vadd.f32 %v342, %v348
      %v366 = vmax.f32 %v350, 0.0
      %v367 = vmax.f32 %v351, 0.0
      %v368 = vmax.f32 %v352, 0.0
      %v369 = vmax.f32 %v353, 0.0
      %v370 = vmax.f32 %v354, 0.0
      %v371 = vmax.f32 %v355, 0.0
      %v372 = vmax.f32 %v356, 0.0
      %v373 = vmax.f32 %v357, 0.0
      %v374 = vmax.f32 %v358, 0.0
      %v375 = vmax.f32 %v359, 0.0
      %v376 = vmax.f32 %v360, 0.0
      %v377 = vmax.f32 %v361, 0.0
      %v378 = vmax.f32 %v362, 0.0
      %v379 = vmax.f32 %v363, 0.0
      %v380 = vmax.f32 %v364, 0.0
      %v381 = vmax.f32 %v365, 0.0
      %v382 = vld [vmem:[#allocation8] sm:$0xff]
      %v383 = vld [vmem:[#allocation8 + $0x8] sm:$0xff]
      %v384 = vld [vmem:[#allocation8 + $0x10] sm:$0xff]
      %v385 = vld [vmem:[#allocation8 + $0x18] sm:$0xff]
      %v386 = vld [vmem:[#allocation8 + $0x20] sm:$0xff]
      %v387 = vld [vmem:[#allocation8 + $0x28] sm:$0xff]
      %v388 = vld [vmem:[#allocation8 + $0x30] sm:$0xff]
      %v389 = vld [vmem:[#allocation8 + $0x38] sm:$0xff]
      %v390 = vld [vmem:[#allocation8 + $0x40] sm:$0xff]
      %v391 = vld [vmem:[#allocation8 + $0x48] sm:$0xff]
      %v392 = vld [vmem:[#allocation8 + $0x50] sm:$0xff]
      %v393 = vld [vmem:[#allocation8 + $0x58] sm:$0xff]
      %v394 = vld [vmem:[#allocation8 + $0x60] sm:$0xff]
      %v395 = vld [vmem:[#allocation8 + $0x68] sm:$0xff]
      %v396 = vld [vmem:[#allocation8 + $0x70] sm:$0xff]
      %v397 = vld [vmem:[#allocation8 + $0x78] sm:$0xff]
      %v398 = vld [vmem:[%s4] sm:$0x1]
      %v400 = vlaneseq
      %v401 = vshrl.u32 %v400, 7
      %v402 = vsub.s32 0, %v401
      %v403 = vrot.slane %v398, %v402
      %405 = vmatprep.subr.mxu0 0.0
      %406 = vmatpush1.msra.mxu0 %v382
      %407 = vmatprep.subr.mxu0 0.0
      %408 = vmatpush1.msra.mxu0 %v383
      %409 = vmatprep.subr.mxu0 0.0
      %410 = vmatpush1.msra.mxu0 %v384
      %411 = vmatprep.subr.mxu0 0.0
      %412 = vmatpush1.msra.mxu0 %v385
      %413 = vmatprep.subr.mxu0 0.0
      %414 = vmatpush1.msra.mxu0 %v386
      %415 = vmatprep.subr.mxu0 0.0
      %416 = vmatpush1.msra.mxu0 %v387
      %417 = vmatprep.subr.mxu0 0.0
      %418 = vmatpush1.msra.mxu0 %v388
      %419 = vmatprep.subr.mxu0 0.0
      %420 = vmatpush1.msra.mxu0 %v389
      %421 = vmatprep.subr.mxu0 0.0
      %422 = vmatpush1.msra.mxu0 %v390
      %423 = vmatprep.subr.mxu0 0.0
      %424 = vmatpush1.msra.mxu0 %v391
      %425 = vmatprep.subr.mxu0 0.0
      %426 = vmatpush1.msra.mxu0 %v392
      %427 = vmatprep.subr.mxu0 0.0
      %428 = vmatpush1.msra.mxu0 %v393
      %429 = vmatprep.subr.mxu0 0.0
      %430 = vmatpush1.msra.mxu0 %v394
      %431 = vmatprep.subr.mxu0 0.0
      %432 = vmatpush1.msra.mxu0 %v395
      %433 = vmatprep.subr.mxu0 0.0
      %434 = vmatpush1.msra.mxu0 %v396
      %435 = vmatprep.subr.mxu0 0.0
      %436 = vmatpush1.msra.mxu0 %v397
      %437 = vmatprep.subr.mxu0 0.0
      %438 = vmatpush1.msra.mxu0 0.0
      %439 = vmatprep.subr.mxu0 0.0
      %440 = vmatpush1.msra.mxu0 0.0
      %441 = vmatprep.subr.mxu0 0.0
      %442 = vmatpush1.msra.mxu0 0.0
      %443 = vmatprep.subr.mxu0 0.0
      %444 = vmatpush1.msra.mxu0 0.0
      %445 = vmatprep.subr.mxu0 0.0
      %446 = vmatpush1.msra.mxu0 0.0
      %447 = vmatprep.subr.mxu0 0.0
      %448 = vmatpush1.msra.mxu0 0.0
      %449 = vmatprep.subr.mxu0 0.0
      %450 = vmatpush1.msra.mxu0 0.0
      %451 = vmatprep.subr.mxu0 0.0
      %452 = vmatpush1.msra.mxu0 0.0
      %453 = vmatprep.subr.mxu0 0.0
      %454 = vmatpush1.msra.mxu0 0.0
      %455 = vmatprep.subr.mxu0 0.0
      %456 = vmatpush1.msra.mxu0 0.0
      %457 = vmatprep.subr.mxu0 0.0
      %458 = vmatpush1.msra.mxu0 0.0
      %459 = vmatprep.subr.mxu0 0.0
      %460 = vmatpush1.msra.mxu0 0.0
      %461 = vmatprep.subr.mxu0 0.0
      %462 = vmatpush1.msra.mxu0 0.0
      %463 = vmatprep.subr.mxu0 0.0
      %464 = vmatpush1.msra.mxu0 0.0
      %465 = vmatprep.subr.mxu0 0.0
      %466 = vmatpush1.msra.mxu0 0.0
      %467 = vmatprep.subr.mxu0 0.0
      %468 = vmatpush1.msra.mxu0 0.0
      %469 = vmatprep.mubr.f32.mxu0 0.0
      %470 = vmatmul.mubr.f32.gmra.mrb[0].mxu0 %v366
      %v471 = vpop.f32.mrb[0].mxu0
      %v472 = vadd.f32 %v403, %v471
      %v473 = vpop.f32.mrb[0].mxu0
      %474 = vmatprep.mubr.f32.mxu0 0.0
      %475 = vmatmul.mubr.f32.gmra.mrb[0].mxu0 %v367
      %v476 = vpop.f32.mrb[0].mxu0
      %v477 = vadd.f32 %v403, %v476
      %v478 = vpop.f32.mrb[0].mxu0
      %479 = vmatprep.mubr.f32.mxu0 0.0
      %480 = vmatmul.mubr.f32.gmra.mrb[0].mxu0 %v368
      %v481 = vpop.f32.mrb[0].mxu0
      %v482 = vadd.f32 %v403, %v481
      %v483 = vpop.f32.mrb[0].mxu0
      %484 = vmatprep.mubr.f32.mxu0 0.0
      %485 = vmatmul.mubr.f32.gmra.mrb[0].mxu0 %v369
      %v486 = vpop.f32.mrb[0].mxu0
      %v487 = vadd.f32 %v403, %v486
      %v488 = vpop.f32.mrb[0].mxu0
      %489 = vmatprep.mubr.f32.mxu0 0.0
      %490 = vmatmul.mubr.f32.gmra.mrb[0].mxu0 %v370
      %v491 = vpop.f32.mrb[0].mxu0
      %v492 = vadd.f32 %v403, %v491
      %v493 = vpop.f32.mrb[0].mxu0
      %494 = vmatprep.mubr.f32.mxu0 0.0
      %495 = vmatmul.mubr.f32.gmra.mrb[0].mxu0 %v371
      %v496 = vpop.f32.mrb[0].mxu0
      %v497 = vadd.f32 %v403, %v496
      %v498 = vpop.f32.mrb[0].mxu0
      %499 = vmatprep.mubr.f32.mxu0 0.0
      %500 = vmatmul.mubr.f32.gmra.mrb[0].mxu0 %v372
      %v501 = vpop.f32.mrb[0].mxu0
      %v502 = vadd.f32 %v403, %v501
      %v503 = vpop.f32.mrb[0].mxu0
      %504 = vmatprep.mubr.f32.mxu0 0.0
      %505 = vmatmul.mubr.f32.gmra.mrb[0].mxu0 %v373
      %v506 = vpop.f32.mrb[0].mxu0
      %v507 = vadd.f32 %v403, %v506
      %v508 = vpop.f32.mrb[0].mxu0
      %509 = vmatprep.mubr.f32.mxu0 0.0
      %510 = vmatmul.mubr.f32.gmra.mrb[0].mxu0 %v374
      %v511 = vpop.f32.mrb[0].mxu0
      %v512 = vadd.f32 %v403, %v511
      %v513 = vpop.f32.mrb[0].mxu0
      %514 = vmatprep.mubr.f32.mxu0 0.0
      %515 = vmatmul.mubr.f32.gmra.mrb[0].mxu0 %v375
      %v516 = vpop.f32.mrb[0].mxu0
      %v517 = vadd.f32 %v403, %v516
      %v518 = vpop.f32.mrb[0].mxu0
      %519 = vmatprep.mubr.f32.mxu0 0.0
      %520 = vmatmul.mubr.f32.gmra.mrb[0].mxu0 %v376
      %v521 = vpop.f32.mrb[0].mxu0
      %v522 = vadd.f32 %v403, %v521
      %v523 = vpop.f32.mrb[0].mxu0
      %524 = vmatprep.mubr.f32.mxu0 0.0
      %525 = vmatmul.mubr.f32.gmra.mrb[0].mxu0 %v377
      %v526 = vpop.f32.mrb[0].mxu0
      %v527 = vadd.f32 %v403, %v526
      %v528 = vpop.f32.mrb[0].mxu0
      %529 = vmatprep.mubr.f32.mxu0 0.0
      %530 = vmatmul.mubr.f32.gmra.mrb[0].mxu0 %v378
      %v531 = vpop.f32.mrb[0].mxu0
      %v532 = vadd.f32 %v403, %v531
      %v533 = vpop.f32.mrb[0].mxu0
      %534 = vmatprep.mubr.f32.mxu0 0.0
      %535 = vmatmul.mubr.f32.gmra.mrb[0].mxu0 %v379
      %v536 = vpop.f32.mrb[0].mxu0
      %v537 = vadd.f32 %v403, %v536
      %v538 = vpop.f32.mrb[0].mxu0
      %539 = vmatprep.mubr.f32.mxu0 0.0
      %540 = vmatmul.mubr.f32.gmra.mrb[0].mxu0 %v380
      %v541 = vpop.f32.mrb[0].mxu0
      %v542 = vadd.f32 %v403, %v541
      %v543 = vpop.f32.mrb[0].mxu0
      %544 = vmatprep.mubr.f32.mxu0 0.0
      %545 = vmatmul.mubr.f32.gmra.mrb[0].mxu0 %v381
      %v546 = vpop.f32.mrb[0].mxu0
      %v547 = vadd.f32 %v403, %v546
      %v548 = vpop.f32.mrb[0].mxu0
      %549 = vdwg.mxu0
      %v550 = vmax.f32 %v472, 0.0
      %v551 = vmax.f32 %v477, 0.0
      %v552 = vmax.f32 %v482, 0.0
      %v553 = vmax.f32 %v487, 0.0
      %v554 = vmax.f32 %v492, 0.0
      %v555 = vmax.f32 %v497, 0.0
      %v556 = vmax.f32 %v502, 0.0
      %v557 = vmax.f32 %v507, 0.0
      %v558 = vmax.f32 %v512, 0.0
      %v559 = vmax.f32 %v517, 0.0
      %v560 = vmax.f32 %v522, 0.0
      %v561 = vmax.f32 %v527, 0.0
      %v562 = vmax.f32 %v532, 0.0
      %v563 = vmax.f32 %v537, 0.0
      %v564 = vmax.f32 %v542, 0.0
      %v565 = vmax.f32 %v547, 0.0
      %v566 = vld [vmem:[#allocation9] sm:$0xff]
      %v567 = vld [vmem:[#allocation9 + $0x8] sm:$0xff]
      %v568 = vld [vmem:[#allocation9 + $0x10] sm:$0xff]
      %v569 = vld [vmem:[#allocation9 + $0x18] sm:$0xff]
      %v570 = vld [vmem:[#allocation9 + $0x20] sm:$0xff]
      %v571 = vld [vmem:[#allocation9 + $0x28] sm:$0xff]
      %v572 = vld [vmem:[#allocation9 + $0x30] sm:$0xff]
      %v573 = vld [vmem:[#allocation9 + $0x38] sm:$0xff]
      %v574 = vld [vmem:[#allocation9 + $0x40] sm:$0xff]
      %v575 = vld [vmem:[#allocation9 + $0x48] sm:$0xff]
      %v576 = vld [vmem:[#allocation9 + $0x50] sm:$0xff]
      %v577 = vld [vmem:[#allocation9 + $0x58] sm:$0xff]
      %v578 = vld [vmem:[#allocation9 + $0x60] sm:$0xff]
      %v579 = vld [vmem:[#allocation9 + $0x68] sm:$0xff]
      %v580 = vld [vmem:[#allocation9 + $0x70] sm:$0xff]
      %v581 = vld [vmem:[#allocation9 + $0x78] sm:$0xff]
      %582 = vmatprep.subr.mxu0 0.0
      %583 = vmatpush1.msra.mxu0 %v566
      %584 = vmatprep.subr.mxu0 0.0
      %585 = vmatpush1.msra.mxu0 %v567
      %586 = vmatprep.subr.mxu0 0.0
      %587 = vmatpush1.msra.mxu0 %v568
      %588 = vmatprep.subr.mxu0 0.0
      %589 = vmatpush1.msra.mxu0 %v569
      %590 = vmatprep.subr.mxu0 0.0
      %591 = vmatpush1.msra.mxu0 %v570
      %592 = vmatprep.subr.mxu0 0.0
      %593 = vmatpush1.msra.mxu0 %v571
      %594 = vmatprep.subr.mxu0 0.0
      %595 = vmatpush1.msra.mxu0 %v572
      %596 = vmatprep.subr.mxu0 0.0
      %597 = vmatpush1.msra.mxu0 %v573
      %598 = vmatprep.subr.mxu0 0.0
      %599 = vmatpush1.msra.mxu0 %v574
      %600 = vmatprep.subr.mxu0 0.0
      %601 = vmatpush1.msra.mxu0 %v575
      %602 = vmatprep.subr.mxu0 0.0
      %603 = vmatpush1.msra.mxu0 %v576
      %604 = vmatprep.subr.mxu0 0.0
      %605 = vmatpush1.msra.mxu0 %v577
      %606 = vmatprep.subr.mxu0 0.0
      %607 = vmatpush1.msra.mxu0 %v578
      %608 = vmatprep.subr.mxu0 0.0
      %609 = vmatpush1.msra.mxu0 %v579
      %610 = vmatprep.subr.mxu0 0.0
      %611 = vmatpush1.msra.mxu0 %v580
      %612 = vmatprep.subr.mxu0 0.0
      %613 = vmatpush1.msra.mxu0 %v581
      %614 = vmatprep.subr.mxu0 0.0
      %615 = vmatpush1.msra.mxu0 0.0
      %616 = vmatprep.subr.mxu0 0.0
      %617 = vmatpush1.msra.mxu0 0.0
      %618 = vmatprep.subr.mxu0 0.0
      %619 = vmatpush1.msra.mxu0 0.0
      %620 = vmatprep.subr.mxu0 0.0
      %621 = vmatpush1.msra.mxu0 0.0
      %622 = vmatprep.subr.mxu0 0.0
      %623 = vmatpush1.msra.mxu0 0.0
      %624 = vmatprep.subr.mxu0 0.0
      %625 = vmatpush1.msra.mxu0 0.0
      %626 = vmatprep.subr.mxu0 0.0
      %627 = vmatpush1.msra.mxu0 0.0
      %628 = vmatprep.subr.mxu0 0.0
      %629 = vmatpush1.msra.mxu0 0.0
      %630 = vmatprep.subr.mxu0 0.0
      %631 = vmatpush1.msra.mxu0 0.0
      %632 = vmatprep.subr.mxu0 0.0
      %633 = vmatpush1.msra.mxu0 0.0
      %634 = vmatprep.subr.mxu0 0.0
      %635 = vmatpush1.msra.mxu0 0.0
      %636 = vmatprep.subr.mxu0 0.0
      %637 = vmatpush1.msra.mxu0 0.0
      %638 = vmatprep.subr.mxu0 0.0
      %639 = vmatpush1.msra.mxu0 0.0
      %640 = vmatprep.subr.mxu0 0.0
      %641 = vmatpush1.msra.mxu0 0.0
      %642 = vmatprep.subr.mxu0 0.0
      %643 = vmatpush1.msra.mxu0 0.0
      %644 = vmatprep.subr.mxu0 0.0
      %645 = vmatpush1.msra.mxu0 0.0
      %646 = vmatprep.mubr.f32.mxu0 0.0
      %647 = vmatmul.mubr.f32.gmra.mrb[0].mxu0 %v550
      %v648 = vpop.f32.mrb[0].mxu0
      %v649 = vadd.f32 0.0, %v648
      %v650 = vpop.f32.mrb[0].mxu0
      %651 = vmatprep.mubr.f32.mxu0 0.0
      %652 = vmatmul.mubr.f32.gmra.mrb[0].mxu0 %v551
      %v653 = vpop.f32.mrb[0].mxu0
      %v654 = vadd.f32 0.0, %v653
      %v655 = vpop.f32.mrb[0].mxu0
      %656 = vmatprep.mubr.f32.mxu0 0.0
      %657 = vmatmul.mubr.f32.gmra.mrb[0].mxu0 %v552
      %v658 = vpop.f32.mrb[0].mxu0
      %v659 = vadd.f32 0.0, %v658
      %v660 = vpop.f32.mrb[0].mxu0
      %661 = vmatprep.mubr.f32.mxu0 0.0
      %662 = vmatmul.mubr.f32.gmra.mrb[0].mxu0 %v553
      %v663 = vpop.f32.mrb[0].mxu0
      %v664 = vadd.f32 0.0, %v663
      %v665 = vpop.f32.mrb[0].mxu0
      %666 = vmatprep.mubr.f32.mxu0 0.0
      %667 = vmatmul.mubr.f32.gmra.mrb[0].mxu0 %v554
      %v668 = vpop.f32.mrb[0].mxu0
      %v669 = vadd.f32 0.0, %v668
      %v670 = vpop.f32.mrb[0].mxu0
      %671 = vmatprep.mubr.f32.mxu0 0.0
      %672 = vmatmul.mubr.f32.gmra.mrb[0].mxu0 %v555
      %v673 = vpop.f32.mrb[0].mxu0
      %v674 = vadd.f32 0.0, %v673
      %v675 = vpop.f32.mrb[0].mxu0
      %676 = vmatprep.mubr.f32.mxu0 0.0
      %677 = vmatmul.mubr.f32.gmra.mrb[0].mxu0 %v556
      %v678 = vpop.f32.mrb[0].mxu0
      %v679 = vadd.f32 0.0, %v678
      %v680 = vpop.f32.mrb[0].mxu0
      %681 = vmatprep.mubr.f32.mxu0 0.0
      %682 = vmatmul.mubr.f32.gmra.mrb[0].mxu0 %v557
      %v683 = vpop.f32.mrb[0].mxu0
      %v684 = vadd.f32 0.0, %v683
      %v685 = vpop.f32.mrb[0].mxu0
      %686 = vmatprep.mubr.f32.mxu0 0.0
      %687 = vmatmul.mubr.f32.gmra.mrb[0].mxu0 %v558
      %v688 = vpop.f32.mrb[0].mxu0
      %v689 = vadd.f32 0.0, %v688
      %v690 = vpop.f32.mrb[0].mxu0
      %691 = vmatprep.mubr.f32.mxu0 0.0
      %692 = vmatmul.mubr.f32.gmra.mrb[0].mxu0 %v559
      %v693 = vpop.f32.mrb[0].mxu0
      %v694 = vadd.f32 0.0, %v693
      %v695 = vpop.f32.mrb[0].mxu0
      %696 = vmatprep.mubr.f32.mxu0 0.0
      %697 = vmatmul.mubr.f32.gmra.mrb[0].mxu0 %v560
      %v698 = vpop.f32.mrb[0].mxu0
      %v699 = vadd.f32 0.0, %v698
      %v700 = vpop.f32.mrb[0].mxu0
      %701 = vmatprep.mubr.f32.mxu0 0.0
      %702 = vmatmul.mubr.f32.gmra.mrb[0].mxu0 %v561
      %v703 = vpop.f32.mrb[0].mxu0
      %v704 = vadd.f32 0.0, %v703
      %v705 = vpop.f32.mrb[0].mxu0
      %706 = vmatprep.mubr.f32.mxu0 0.0
      %707 = vmatmul.mubr.f32.gmra.mrb[0].mxu0 %v562
      %v708 = vpop.f32.mrb[0].mxu0
      %v709 = vadd.f32 0.0, %v708
      %v710 = vpop.f32.mrb[0].mxu0
      %711 = vmatprep.mubr.f32.mxu0 0.0
      %712 = vmatmul.mubr.f32.gmra.mrb[0].mxu0 %v563
      %v713 = vpop.f32.mrb[0].mxu0
      %v714 = vadd.f32 0.0, %v713
      %v715 = vpop.f32.mrb[0].mxu0
      %716 = vmatprep.mubr.f32.mxu0 0.0
      %717 = vmatmul.mubr.f32.gmra.mrb[0].mxu0 %v564
      %v718 = vpop.f32.mrb[0].mxu0
      %v719 = vadd.f32 0.0, %v718
      %v720 = vpop.f32.mrb[0].mxu0
      %721 = vmatprep.mubr.f32.mxu0 0.0
      %722 = vmatmul.mubr.f32.gmra.mrb[0].mxu0 %v565
      %v723 = vpop.f32.mrb[0].mxu0
      %v724 = vadd.f32 0.0, %v723
      %v725 = vpop.f32.mrb[0].mxu0
      %726 = vdwg.mxu0
      %727 = vst [vmem:[#allocation11] sm:$0xff] %v649
      %728 = vst [vmem:[#allocation11 + $0x8] sm:$0xff] %v654
      %729 = vst [vmem:[#allocation11 + $0x10] sm:$0xff] %v659
      %730 = vst [vmem:[#allocation11 + $0x18] sm:$0xff] %v664
      %731 = vst [vmem:[#allocation11 + $0x20] sm:$0xff] %v669
      %732 = vst [vmem:[#allocation11 + $0x28] sm:$0xff] %v674
      %733 = vst [vmem:[#allocation11 + $0x30] sm:$0xff] %v679
      %734 = vst [vmem:[#allocation11 + $0x38] sm:$0xff] %v684
      %735 = vst [vmem:[#allocation11 + $0x40] sm:$0xff] %v689
      %736 = vst [vmem:[#allocation11 + $0x48] sm:$0xff] %v694
      %737 = vst [vmem:[#allocation11 + $0x50] sm:$0xff] %v699
      %738 = vst [vmem:[#allocation11 + $0x58] sm:$0xff] %v704
      %739 = vst [vmem:[#allocation11 + $0x60] sm:$0xff] %v709
      %740 = vst [vmem:[#allocation11 + $0x68] sm:$0xff] %v714
      %741 = vst [vmem:[#allocation11 + $0x70] sm:$0xff] %v719
      %742 = vst [vmem:[#allocation11 + $0x78] sm:$0xff] %v724
    $region49: #{tpu_custom_call.1} parent=1 // pred_fallthru
      _
    // Predicated region
    $region50: #{tpu_custom_call.1} parent=1 // pred_check
      _
    $region51: #{tpu_custom_call.1} parent=1 // pred_check_branch
      %744 = sbr.rel (0) target = $region53
    $region52: #{tpu_custom_call.1} parent=1 // pred_region
      %s746 = ssub.s32 2048, 2048
      %747 = vsyncadd [#allocation5], %s746
      %s748 = sshll.u32 [#allocation11], 4
      %s749 = int_to_ptr.vmem [resolvable:$true] %s748
      %754 = dma.vmem_to_hbm [thread:$0]  %s749, 2048, %s6, [#allocation5], 128, 128, 8
    $region53: #{tpu_custom_call.1} parent=1 // pred_fallthru
      _
    // Predicated region
    $region54: #{tpu_custom_call.1} parent=1 // pred_check
      _
    $region55: #{tpu_custom_call.1} parent=1 // pred_check_branch
      %756 = sbr.rel (0) target = $region57
    $region56: #{tpu_custom_call.1} parent=1 // pred_region
      %757 = dma.done [#allocation5], 2048
    $region57: #{tpu_custom_call.1} parent=1 // pred_fallthru
      _
    %758 = vsyncpa [#allocation4], 1
    %759 = vsyncpa [#allocation7], 1
    %760 = vsyncpa [#allocation10], 1
    %761 = vsyncpa [#allocation5], 1

</llo_original>
